<compile_context>
chip_gen: v6e
topology: v6e:2x2x1
jax: 0.10.0
libtpu: 0.0.40
codegen_flags: <defaults>
</compile_context>

<pallas_src>
import jax
import jax.numpy as jnp
from jax.experimental import pallas as pl
from jax.experimental.pallas import tpu as pltpu


def _round_up(x, m):
    return ((x + m - 1) // m) * m


def _make_cbow_kernel(L, U):
    """Builds the kernel for static sequence length L and unroll factor U."""
    rem = L % U  # number of valid rows in the last grid step (0 => full block)

    def kernel(words_ref, *refs):
        # refs layout: [U gathered embedding rows, wT, b] | [out] | [acc scratch]
        emb_refs = refs[:U]               # each (1, 1, E) f32
        wT_ref = refs[U]                  # (E, ntags_pad) f32
        b_ref = refs[U + 1]               # (1, ntags_pad) f32
        out_ref = refs[U + 2]             # (1, ntags_pad) f32
        acc_ref = refs[U + 3]             # (1, E) f32 VMEM scratch

        i = pl.program_id(0)

        @pl.when(i == 0)
        def _():
            acc_ref[...] = jnp.zeros_like(acc_ref)

        # Sum this step's U embedding rows.  Only tail rows (j >= rem) can be
        # padding, and only on the last step, so only those need masking.
        block = None
        for j in range(U):
            row = emb_refs[j][0]          # (1, E)
            if rem != 0 and j >= rem:
                valid = (i * U + j) < L
                row = jnp.where(valid, row, jnp.zeros_like(row))
            block = row if block is None else block + row
        acc_ref[...] += block

        @pl.when(i == pl.num_programs(0) - 1)
        def _():
            # Linear: (1, E) @ (E, ntags_pad) + bias (padded lanes are zero).
            logits = jnp.dot(acc_ref[...], wT_ref[...],
                             preferred_element_type=jnp.float32)
            out_ref[...] = logits + b_ref[...]

    return kernel


def cbow_forward(words, emb_weight, lin_weight, lin_bias, *, unroll=8):
    L = int(words.shape[0])
    nwords, E = emb_weight.shape
    ntags = lin_weight.shape[0]
    ntags_pad = _round_up(ntags, 128)

    U = max(1, min(unroll, L))
    n_steps = -(-L // U)
    L_pad = n_steps * U

    # Pad word ids to a multiple of U (padded slots gather row 0 but are masked
    # to zero inside the kernel, so no extra copy of the embedding table).
    words_i32 = jnp.zeros((L_pad,), jnp.int32).at[:L].set(words.astype(jnp.int32))

    # (nwords, E) -> (nwords, 1, E): gathered (1, 1, E) blocks then have their
    # last two dims equal to the full array dims (layout-legal row gather).
    emb3d = emb_weight.astype(jnp.float32).reshape(nwords, 1, E)

    # Pre-transpose nn.Linear weight to (E, ntags) and zero-pad the lane dim
    # so the output store is an unmasked, lane-dense vst.
    wT = jnp.zeros((E, ntags_pad), jnp.float32).at[:, :ntags].set(
        lin_weight.astype(jnp.float32).T)
    b = jnp.zeros((1, ntags_pad), jnp.float32).at[:, :ntags].set(
        lin_bias.astype(jnp.float32).reshape(1, ntags))

    # One BlockSpec per unrolled row; each reads words[i*U + j] from SMEM.
    emb_specs = [
        pl.BlockSpec((1, 1, E), lambda i, words, j=j: (words[i * U + j], 0, 0))
        for j in range(U)
    ]

    grid_spec = pltpu.PrefetchScalarGridSpec(
        num_scalar_prefetch=1,
        grid=(n_steps,),
        in_specs=emb_specs + [
            pl.BlockSpec((E, ntags_pad), lambda i, words: (0, 0)),
            pl.BlockSpec((1, ntags_pad), lambda i, words: (0, 0)),
        ],
        out_specs=pl.BlockSpec((1, ntags_pad), lambda i, words: (0, 0)),
        scratch_shapes=[pltpu.VMEM((1, E), jnp.float32)],
    )

    out_padded = pl.pallas_call(
        _make_cbow_kernel(L, U),
        out_shape=jax.ShapeDtypeStruct((1, ntags_pad), jnp.float32),
        grid_spec=grid_spec,
        compiler_params=pltpu.CompilerParams(
            dimension_semantics=("arbitrary",),  # reduction over the sequence
        ),
    )(words_i32, *([emb3d] * U), wT, b)

    # Drop the zero-padded lanes; matches nn.Linear(emb_size, ntags) output.
    return out_padded[:, :ntags]


def xavier_uniform(key, shape):
    fan_out, fan_in = shape  # torch convention for 2-D tensors
    bound = (6.0 / (fan_in + fan_out)) ** 0.5
    return jax.random.uniform(key, shape, jnp.float32, -bound, bound)


if __name__ == "__main__":
    # Small, CBoW-consistent shapes.  seq_len=10 with unroll=8 exercises both
    # multi-step accumulation and the tail-row masking path.
    nwords, ntags, emb_size, seq_len = 100, 5, 32, 10

    key = jax.random.PRNGKey(0)
    k_emb, k_w, k_b, k_words = jax.random.split(key, 4)

    emb_weight = xavier_uniform(k_emb, (nwords, emb_size))   # nn.Embedding weight
    lin_weight = xavier_uniform(k_w, (ntags, emb_size))      # nn.Linear weight
    # nn.Linear bias default init: U(-1/sqrt(fan_in), 1/sqrt(fan_in))
    b_bound = 1.0 / (emb_size ** 0.5)
    lin_bias = jax.random.uniform(k_b, (ntags,), jnp.float32, -b_bound, b_bound)

    words = jax.random.randint(k_words, (seq_len,), 0, nwords, jnp.int32)

    out = cbow_forward(words, emb_weight, lin_weight, lin_bias, unroll=8)
    out = jax.block_until_ready(out)

    # Pure-JAX reference of the PyTorch forward.
    ref = (emb_weight[words].sum(axis=0).reshape(1, -1) @ lin_weight.T
           + lin_bias.reshape(1, -1))

    assert out.shape == (1, ntags)
    assert jnp.allclose(out, ref, atol=1e-5, rtol=1e-5), (out, ref)
    print("KERNEL_OK")
</pallas_src>

<mosaic_0001>
module attributes {stable_mosaic.version = 11 : i64} {
  func.func @kernel(%arg0: i32, %arg1: memref<16xi32, #tpu.memory_space<smem>>, %arg2: memref<1x1x32xf32, #tpu.memory_space<vmem>>, %arg3: memref<1x1x32xf32, #tpu.memory_space<vmem>>, %arg4: memref<1x1x32xf32, #tpu.memory_space<vmem>>, %arg5: memref<1x1x32xf32, #tpu.memory_space<vmem>>, %arg6: memref<1x1x32xf32, #tpu.memory_space<vmem>>, %arg7: memref<1x1x32xf32, #tpu.memory_space<vmem>>, %arg8: memref<1x1x32xf32, #tpu.memory_space<vmem>>, %arg9: memref<1x1x32xf32, #tpu.memory_space<vmem>>, %arg10: memref<32x128xf32, #tpu.memory_space<vmem>>, %arg11: memref<1x128xf32, #tpu.memory_space<vmem>>, %arg12: memref<1x128xf32, #tpu.memory_space<vmem>>, %arg13: memref<1x32xf32, #tpu.memory_space<vmem>>) attributes {dimension_semantics = [#tpu.dimension_semantics<arbitrary>], iteration_bounds = array<i64: 2>, scalar_prefetch = 1 : i64, scratch_operands = 1 : i64, tpu.core_type = #tpu.core_type<tc>, window_params = [{transform_indices = @transform_0, window_bounds = array<i64: 1, 1, 32>}, {transform_indices = @transform_1, window_bounds = array<i64: 1, 1, 32>}, {transform_indices = @transform_2, window_bounds = array<i64: 1, 1, 32>}, {transform_indices = @transform_3, window_bounds = array<i64: 1, 1, 32>}, {transform_indices = @transform_4, window_bounds = array<i64: 1, 1, 32>}, {transform_indices = @transform_5, window_bounds = array<i64: 1, 1, 32>}, {transform_indices = @transform_6, window_bounds = array<i64: 1, 1, 32>}, {transform_indices = @transform_7, window_bounds = array<i64: 1, 1, 32>}, {pipeline_mode = #tpu.pipeline_mode<synchronous>, transform_indices = @transform_8, window_bounds = array<i64: 32, 128>}, {pipeline_mode = #tpu.pipeline_mode<synchronous>, transform_indices = @transform_9, window_bounds = array<i64: 1, 128>}, {pipeline_mode = #tpu.pipeline_mode<synchronous>, transform_indices = @transform_10, window_bounds = array<i64: 1, 128>}]} {
    %c0_i32 = arith.constant 0 : i32
    %0 = arith.cmpi eq, %arg0, %c0_i32 : i32
    %1 = arith.extui %0 : i1 to i32
    %c0_i32_0 = arith.constant 0 : i32
    %2 = arith.cmpi ne, %1, %c0_i32_0 : i32
    scf.if %2 {
      %cst_44 = arith.constant 0.000000e+00 : f32
      %62 = vector.broadcast %cst_44 : f32 to vector<1x32xf32>
      %c0_45 = arith.constant 0 : index
      %c0_46 = arith.constant 0 : index
      %63 = vector.load %arg13[%c0_45, %c0_46] : memref<1x32xf32, #tpu.memory_space<vmem>>, vector<1x32xf32>
      tpu.vector_store %arg13[%c0_45, %c0_46], %62 {strides = array<i32>} : memref<1x32xf32, #tpu.memory_space<vmem>>, vector<1x32xf32>,
    } else {
    }
    %c0 = arith.constant 0 : index
    %c0_1 = arith.constant 0 : index
    %c0_2 = arith.constant 0 : index
    %3 = vector.load %arg2[%c0, %c0_1, %c0_2] : memref<1x1x32xf32, #tpu.memory_space<vmem>>, vector<1x1x32xf32>
    %4 = vector.shape_cast %3 : vector<1x1x32xf32> to vector<1x32xf32>
    %c0_3 = arith.constant 0 : index
    %c0_4 = arith.constant 0 : index
    %c0_5 = arith.constant 0 : index
    %5 = vector.load %arg3[%c0_3, %c0_4, %c0_5] : memref<1x1x32xf32, #tpu.memory_space<vmem>>, vector<1x1x32xf32>
    %6 = vector.shape_cast %5 : vector<1x1x32xf32> to vector<1x32xf32>
    %7 = arith.addf %4, %6 : vector<1x32xf32>
    %c0_6 = arith.constant 0 : index
    %c0_7 = arith.constant 0 : index
    %c0_8 = arith.constant 0 : index
    %8 = vector.load %arg4[%c0_6, %c0_7, %c0_8] : memref<1x1x32xf32, #tpu.memory_space<vmem>>, vector<1x1x32xf32>
    %9 = vector.shape_cast %8 : vector<1x1x32xf32> to vector<1x32xf32>
    %c8_i32 = arith.constant 8 : i32
    %10 = arith.muli %arg0, %c8_i32 : i32
    %c2_i32 = arith.constant 2 : i32
    %11 = arith.addi %10, %c2_i32 : i32
    %c10_i32 = arith.constant 10 : i32
    %12 = arith.cmpi slt, %11, %c10_i32 : i32
    %cst = arith.constant 0.000000e+00 : f32
    %13 = vector.broadcast %cst : f32 to vector<1x32xf32>
    %14 = arith.select %12, %9, %13 : vector<1x32xf32>
    %15 = arith.addf %7, %14 : vector<1x32xf32>
    %c0_9 = arith.constant 0 : index
    %c0_10 = arith.constant 0 : index
    %c0_11 = arith.constant 0 : index
    %16 = vector.load %arg5[%c0_9, %c0_10, %c0_11] : memref<1x1x32xf32, #tpu.memory_space<vmem>>, vector<1x1x32xf32>
    %17 = vector.shape_cast %16 : vector<1x1x32xf32> to vector<1x32xf32>
    %c8_i32_12 = arith.constant 8 : i32
    %18 = arith.muli %arg0, %c8_i32_12 : i32
    %c3_i32 = arith.constant 3 : i32
    %19 = arith.addi %18, %c3_i32 : i32
    %c10_i32_13 = arith.constant 10 : i32
    %20 = arith.cmpi slt, %19, %c10_i32_13 : i32
    %cst_14 = arith.constant 0.000000e+00 : f32
    %21 = vector.broadcast %cst_14 : f32 to vector<1x32xf32>
    %22 = arith.select %20, %17, %21 : vector<1x32xf32>
    %23 = arith.addf %15, %22 : vector<1x32xf32>
    %c0_15 = arith.constant 0 : index
    %c0_16 = arith.constant 0 : index
    %c0_17 = arith.constant 0 : index
    %24 = vector.load %arg6[%c0_15, %c0_16, %c0_17] : memref<1x1x32xf32, #tpu.memory_space<vmem>>, vector<1x1x32xf32>
    %25 = vector.shape_cast %24 : vector<1x1x32xf32> to vector<1x32xf32>
    %c8_i32_18 = arith.constant 8 : i32
    %26 = arith.muli %arg0, %c8_i32_18 : i32
    %c4_i32 = arith.constant 4 : i32
    %27 = arith.addi %26, %c4_i32 : i32
    %c10_i32_19 = arith.constant 10 : i32
    %28 = arith.cmpi slt, %27, %c10_i32_19 : i32
    %cst_20 = arith.constant 0.000000e+00 : f32
    %29 = vector.broadcast %cst_20 : f32 to vector<1x32xf32>
    %30 = arith.select %28, %25, %29 : vector<1x32xf32>
    %31 = arith.addf %23, %30 : vector<1x32xf32>
    %c0_21 = arith.constant 0 : index
    %c0_22 = arith.constant 0 : index
    %c0_23 = arith.constant 0 : index
    %32 = vector.load %arg7[%c0_21, %c0_22, %c0_23] : memref<1x1x32xf32, #tpu.memory_space<vmem>>, vector<1x1x32xf32>
    %33 = vector.shape_cast %32 : vector<1x1x32xf32> to vector<1x32xf32>
    %c8_i32_24 = arith.constant 8 : i32
    %34 = arith.muli %arg0, %c8_i32_24 : i32
    %c5_i32 = arith.constant 5 : i32
    %35 = arith.addi %34, %c5_i32 : i32
    %c10_i32_25 = arith.constant 10 : i32
    %36 = arith.cmpi slt, %35, %c10_i32_25 : i32
    %cst_26 = arith.constant 0.000000e+00 : f32
    %37 = vector.broadcast %cst_26 : f32 to vector<1x32xf32>
    %38 = arith.select %36, %33, %37 : vector<1x32xf32>
    %39 = arith.addf %31, %38 : vector<1x32xf32>
    %c0_27 = arith.constant 0 : index
    %c0_28 = arith.constant 0 : index
    %c0_29 = arith.constant 0 : index
    %40 = vector.load %arg8[%c0_27, %c0_28, %c0_29] : memref<1x1x32xf32, #tpu.memory_space<vmem>>, vector<1x1x32xf32>
    %41 = vector.shape_cast %40 : vector<1x1x32xf32> to vector<1x32xf32>
    %c8_i32_30 = arith.constant 8 : i32
    %42 = arith.muli %arg0, %c8_i32_30 : i32
    %c6_i32 = arith.constant 6 : i32
    %43 = arith.addi %42, %c6_i32 : i32
    %c10_i32_31 = arith.constant 10 : i32
    %44 = arith.cmpi slt, %43, %c10_i32_31 : i32
    %cst_32 = arith.constant 0.000000e+00 : f32
    %45 = vector.broadcast %cst_32 : f32 to vector<1x32xf32>
    %46 = arith.select %44, %41, %45 : vector<1x32xf32>
    %47 = arith.addf %39, %46 : vector<1x32xf32>
    %c0_33 = arith.constant 0 : index
    %c0_34 = arith.constant 0 : index
    %c0_35 = arith.constant 0 : index
    %48 = vector.load %arg9[%c0_33, %c0_34, %c0_35] : memref<1x1x32xf32, #tpu.memory_space<vmem>>, vector<1x1x32xf32>
    %49 = vector.shape_cast %48 : vector<1x1x32xf32> to vector<1x32xf32>
    %c8_i32_36 = arith.constant 8 : i32
    %50 = arith.muli %arg0, %c8_i32_36 : i32
    %c7_i32 = arith.constant 7 : i32
    %51 = arith.addi %50, %c7_i32 : i32
    %c10_i32_37 = arith.constant 10 : i32
    %52 = arith.cmpi slt, %51, %c10_i32_37 : i32
    %cst_38 = arith.constant 0.000000e+00 : f32
    %53 = vector.broadcast %cst_38 : f32 to vector<1x32xf32>
    %54 = arith.select %52, %49, %53 : vector<1x32xf32>
    %55 = arith.addf %47, %54 : vector<1x32xf32>
    %c0_39 = arith.constant 0 : index
    %c0_40 = arith.constant 0 : index
    %56 = vector.load %arg13[%c0_39, %c0_40] : memref<1x32xf32, #tpu.memory_space<vmem>>, vector<1x32xf32>
    %57 = arith.addf %56, %55 : vector<1x32xf32>
    %c0_41 = arith.constant 0 : index
    %c0_42 = arith.constant 0 : index
    %58 = vector.load %arg13[%c0_41, %c0_42] : memref<1x32xf32, #tpu.memory_space<vmem>>, vector<1x32xf32>
    tpu.vector_store %arg13[%c0_41, %c0_42], %57 {strides = array<i32>} : memref<1x32xf32, #tpu.memory_space<vmem>>, vector<1x32xf32>,
    %c1_i32 = arith.constant 1 : i32
    %59 = arith.cmpi eq, %arg0, %c1_i32 : i32
    %60 = arith.extui %59 : i1 to i32
    %c0_i32_43 = arith.constant 0 : i32
    %61 = arith.cmpi ne, %60, %c0_i32_43 : i32
    scf.if %61 {
      %c0_44 = arith.constant 0 : index
      %c0_45 = arith.constant 0 : index
      %62 = vector.load %arg13[%c0_44, %c0_45] : memref<1x32xf32, #tpu.memory_space<vmem>>, vector<1x32xf32>
      %c0_46 = arith.constant 0 : index
      %c0_47 = arith.constant 0 : index
      %63 = vector.load %arg10[%c0_46, %c0_47] : memref<32x128xf32, #tpu.memory_space<vmem>>, vector<32x128xf32>
      %cst_48 = arith.constant dense<0.000000e+00> : vector<1x128xf32>
      %64 = tpu.matmul %62, %63, %cst_48 {dimension_numbers = #tpu.dot_dimension_numbers<[1], [0], [0], [1], [0, 0, 1, 1], [], []>} : vector<1x32xf32>, vector<32x128xf32>, vector<1x128xf32> -> vector<1x128xf32>
      %c0_49 = arith.constant 0 : index
      %c0_50 = arith.constant 0 : index
      %65 = vector.load %arg11[%c0_49, %c0_50] : memref<1x128xf32, #tpu.memory_space<vmem>>, vector<1x128xf32>
      %66 = arith.addf %64, %65 : vector<1x128xf32>
      %c0_51 = arith.constant 0 : index
      %c0_52 = arith.constant 0 : index
      %67 = vector.load %arg12[%c0_51, %c0_52] : memref<1x128xf32, #tpu.memory_space<vmem>>, vector<1x128xf32>
      tpu.vector_store %arg12[%c0_51, %c0_52], %66 {strides = array<i32>} : memref<1x128xf32, #tpu.memory_space<vmem>>, vector<1x128xf32>,
    } else {
    }
    return
  }
  func.func @transform_0(%arg0: i32, %arg1: memref<16xi32, #tpu.memory_space<smem>>) -> (i32, i32, i32) {
    %c8_i32 = arith.constant 8 : i32
    %0 = arith.muli %arg0, %c8_i32 : i32
    %c0_i32 = arith.constant 0 : i32
    %1 = arith.addi %0, %c0_i32 : i32
    %2 = arith.index_cast %1 : i32 to index
    %3 = memref.load %arg1[%2] : memref<16xi32, #tpu.memory_space<smem>>
    %c0_i32_0 = arith.constant 0 : i32
    %c0_i32_1 = arith.constant 0 : i32
    %c0_i32_2 = arith.constant 0 : i32
    return %3, %c0_i32_0, %c0_i32_1 : i32, i32, i32
  }
  func.func @transform_1(%arg0: i32, %arg1: memref<16xi32, #tpu.memory_space<smem>>) -> (i32, i32, i32) {
    %c8_i32 = arith.constant 8 : i32
    %0 = arith.muli %arg0, %c8_i32 : i32
    %c1_i32 = arith.constant 1 : i32
    %1 = arith.addi %0, %c1_i32 : i32
    %2 = arith.index_cast %1 : i32 to index
    %3 = memref.load %arg1[%2] : memref<16xi32, #tpu.memory_space<smem>>
    %c0_i32 = arith.constant 0 : i32
    %c0_i32_0 = arith.constant 0 : i32
    %c0_i32_1 = arith.constant 0 : i32
    return %3, %c0_i32, %c0_i32_0 : i32, i32, i32
  }
  func.func @transform_2(%arg0: i32, %arg1: memref<16xi32, #tpu.memory_space<smem>>) -> (i32, i32, i32) {
    %c8_i32 = arith.constant 8 : i32
    %0 = arith.muli %arg0, %c8_i32 : i32
    %c2_i32 = arith.constant 2 : i32
    %1 = arith.addi %0, %c2_i32 : i32
    %2 = arith.index_cast %1 : i32 to index
    %3 = memref.load %arg1[%2] : memref<16xi32, #tpu.memory_space<smem>>
    %c0_i32 = arith.constant 0 : i32
    %c0_i32_0 = arith.constant 0 : i32
    %c0_i32_1 = arith.constant 0 : i32
    return %3, %c0_i32, %c0_i32_0 : i32, i32, i32
  }
  func.func @transform_3(%arg0: i32, %arg1: memref<16xi32, #tpu.memory_space<smem>>) -> (i32, i32, i32) {
    %c8_i32 = arith.constant 8 : i32
    %0 = arith.muli %arg0, %c8_i32 : i32
    %c3_i32 = arith.constant 3 : i32
    %1 = arith.addi %0, %c3_i32 : i32
    %2 = arith.index_cast %1 : i32 to index
    %3 = memref.load %arg1[%2] : memref<16xi32, #tpu.memory_space<smem>>
    %c0_i32 = arith.constant 0 : i32
    %c0_i32_0 = arith.constant 0 : i32
    %c0_i32_1 = arith.constant 0 : i32
    return %3, %c0_i32, %c0_i32_0 : i32, i32, i32
  }
  func.func @transform_4(%arg0: i32, %arg1: memref<16xi32, #tpu.memory_space<smem>>) -> (i32, i32, i32) {
    %c8_i32 = arith.constant 8 : i32
    %0 = arith.muli %arg0, %c8_i32 : i32
    %c4_i32 = arith.constant 4 : i32
    %1 = arith.addi %0, %c4_i32 : i32
    %2 = arith.index_cast %1 : i32 to index
    %3 = memref.load %arg1[%2] : memref<16xi32, #tpu.memory_space<smem>>
    %c0_i32 = arith.constant 0 : i32
    %c0_i32_0 = arith.constant 0 : i32
    %c0_i32_1 = arith.constant 0 : i32
    return %3, %c0_i32, %c0_i32_0 : i32, i32, i32
  }
  func.func @transform_5(%arg0: i32, %arg1: memref<16xi32, #tpu.memory_space<smem>>) -> (i32, i32, i32) {
    %c8_i32 = arith.constant 8 : i32
    %0 = arith.muli %arg0, %c8_i32 : i32
    %c5_i32 = arith.constant 5 : i32
    %1 = arith.addi %0, %c5_i32 : i32
    %2 = arith.index_cast %1 : i32 to index
    %3 = memref.load %arg1[%2] : memref<16xi32, #tpu.memory_space<smem>>
    %c0_i32 = arith.constant 0 : i32
    %c0_i32_0 = arith.constant 0 : i32
    %c0_i32_1 = arith.constant 0 : i32
    return %3, %c0_i32, %c0_i32_0 : i32, i32, i32
  }
  func.func @transform_6(%arg0: i32, %arg1: memref<16xi32, #tpu.memory_space<smem>>) -> (i32, i32, i32) {
    %c8_i32 = arith.constant 8 : i32
    %0 = arith.muli %arg0, %c8_i32 : i32
    %c6_i32 = arith.constant 6 : i32
    %1 = arith.addi %0, %c6_i32 : i32
    %2 = arith.index_cast %1 : i32 to index
    %3 = memref.load %arg1[%2] : memref<16xi32, #tpu.memory_space<smem>>
    %c0_i32 = arith.constant 0 : i32
    %c0_i32_0 = arith.constant 0 : i32
    %c0_i32_1 = arith.constant 0 : i32
    return %3, %c0_i32, %c0_i32_0 : i32, i32, i32
  }
  func.func @transform_7(%arg0: i32, %arg1: memref<16xi32, #tpu.memory_space<smem>>) -> (i32, i32, i32) {
    %c8_i32 = arith.constant 8 : i32
    %0 = arith.muli %arg0, %c8_i32 : i32
    %c7_i32 = arith.constant 7 : i32
    %1 = arith.addi %0, %c7_i32 : i32
    %2 = arith.index_cast %1 : i32 to index
    %3 = memref.load %arg1[%2] : memref<16xi32, #tpu.memory_space<smem>>
    %c0_i32 = arith.constant 0 : i32
    %c0_i32_0 = arith.constant 0 : i32
    %c0_i32_1 = arith.constant 0 : i32
    return %3, %c0_i32, %c0_i32_0 : i32, i32, i32
  }
  func.func @transform_8(%arg0: i32, %arg1: memref<16xi32, #tpu.memory_space<smem>>) -> (i32, i32) {
    %c0_i32 = arith.constant 0 : i32
    %c0_i32_0 = arith.constant 0 : i32
    %c0_i32_1 = arith.constant 0 : i32
    return %c0_i32, %c0_i32_0 : i32, i32
  }
  func.func @transform_9(%arg0: i32, %arg1: memref<16xi32, #tpu.memory_space<smem>>) -> (i32, i32) {
    %c0_i32 = arith.constant 0 : i32
    %c0_i32_0 = arith.constant 0 : i32
    %c0_i32_1 = arith.constant 0 : i32
    return %c0_i32, %c0_i32_0 : i32, i32
  }
  func.func @transform_10(%arg0: i32, %arg1: memref<16xi32, #tpu.memory_space<smem>>) -> (i32, i32) {
    %c0_i32 = arith.constant 0 : i32
    %c0_i32_0 = arith.constant 0 : i32
    %c0_i32_1 = arith.constant 0 : i32
    return %c0_i32, %c0_i32_0 : i32, i32
  }
}

</mosaic_0001>

<llo_original>
// kernel: tpu_custom_call.1
$region0: #{tpu_custom_call.1}
  #allocation0 [shape = 'u32[]', space=smem, size = 0x4, offset = 0x4, fixed_abs, tag = 'smem constant byte address 0x4 - core index']
  #allocation1 [shape = 'u32[144,128]{1,0:T(1,128)}', space=vmem, size = 0x12000, scoped, tag = 'internal scratch']
  #allocation2 [shape = 'f32[1,32]{1,0:T(1,128)}', space=vmem, size = 0x200, scoped, tag = 'scratch operand']
  #allocation3 [shape = 's32[1]{0}', space=sflag, size = 0x4, scoped, tag = 'scoped memory for tpu_custom_call.1']
  #allocation4 [shape = 'u8[512]{0}', space=smem, size = 0x200, scoped, tag = 'prefetched SMEM operand 0']
  %s0 = inlined_call_operand.vmem [shape: s32[16], index: 0, kind: input, shape index: {}]
  %s1 = inlined_call_operand.vmem [shape: f32[100,1,32], index: 1, kind: input, shape index: {}]
  %s2 = inlined_call_operand.vmem [shape: f32[100,1,32], index: 2, kind: input, shape index: {}]
  %s3 = inlined_call_operand.vmem [shape: f32[100,1,32], index: 3, kind: input, shape index: {}]
  %s4 = inlined_call_operand.vmem [shape: f32[100,1,32], index: 4, kind: input, shape index: {}]
  %s5 = inlined_call_operand.vmem [shape: f32[100,1,32], index: 5, kind: input, shape index: {}]
  %s6 = inlined_call_operand.vmem [shape: f32[100,1,32], index: 6, kind: input, shape index: {}]
  %s7 = inlined_call_operand.vmem [shape: f32[100,1,32], index: 7, kind: input, shape index: {}]
  %s8 = inlined_call_operand.vmem [shape: f32[100,1,32], index: 8, kind: input, shape index: {}]
  %s9 = inlined_call_operand.vmem [shape: f32[32,128], index: 9, kind: input, shape index: {}]
  %s10 = inlined_call_operand.vmem [shape: f32[1,128], index: 10, kind: input, shape index: {}]
  %s11 = inlined_call_operand.hbm [shape: f32[1,128], index: 11, kind: output, shape index: {}]
  %s12 = sld [smem:[#allocation0]]
  $region81: #{tpu_custom_call.1} parent=0
    _
  %s14 = ssub.s32 1, %s12
  %s15 = scalar_select 0, %s14, %s12
  %s16 = sshll.u32 %s0, 4
  %s17 = int_to_ptr.vmem [resolvable:$true] %s16
  %19 = dma.vmem_to_smem %s17, 16, [#allocation4], [#allocation3]
  %20 = dma.done [#allocation3], 16
  %21 = sfence
  $region1: #{tpu_custom_call.1} parent=0
    #allocation5 [shape = 'u8[512]{0}', space=vmem, size = 0x400, scoped, tag = 'output window, operand 0, single buffered']
    #allocation6 [shape = 's32[2]{0}', space=sflag, size = 0x8, scoped, tag = 'scoped memory for tpu_custom_call.1']
    %22 = vsyncpa [#allocation6], 0
    loop: start=0, step=1, limit=4
    $region2: #{tpu_custom_call.1} parent=1 // loop_pre_header
      _
    $region3: #{tpu_custom_call.1} parent=1 // loop_header
      %s24 = sphi 0, %s28
      %p25 = scmp.ge.s32.totalorder %s24, 4
      %s38 = sphi 0, %s40
      %s41 = sphi 0, %s38
      %s42 = sphi 0, %s41
      %s58 = sphi 0, %s42
      %s70 = sphi 0, %s72
      %s73 = sphi 0, %s70
      %s74 = sphi 0, %s73
      %s90 = sphi 0, %s74
      %s102 = sphi 0, %s104
      %s105 = sphi 0, %s102
      %s106 = sphi 0, %s105
      %s122 = sphi 0, %s106
      %s134 = sphi 0, %s136
      %s137 = sphi 0, %s134
      %s138 = sphi 0, %s137
      %s154 = sphi 0, %s138
      %s166 = sphi 0, %s168
      %s169 = sphi 0, %s166
      %s170 = sphi 0, %s169
      %s186 = sphi 0, %s170
      %s198 = sphi 0, %s200
      %s201 = sphi 0, %s198
      %s202 = sphi 0, %s201
      %s218 = sphi 0, %s202
      %s230 = sphi 0, %s232
      %s233 = sphi 0, %s230
      %s234 = sphi 0, %s233
      %s250 = sphi 0, %s234
      %s262 = sphi 0, %s264
      %s265 = sphi 0, %s262
      %s266 = sphi 0, %s265
      %s282 = sphi 0, %s266
      %s286 = sphi 0, %s286
      %s288 = sphi 0, %s286
      %s289 = sphi 0, %s288
      %s303 = sphi 0, %s289
      %s307 = sphi 0, %s307
      %s309 = sphi 0, %s307
      %s310 = sphi 0, %s309
      %s324 = sphi 0, %s310
      %s328 = sphi 0, %s328
      %s330 = sphi 0, %s328
      %s331 = sphi 0, %s330
      %s345 = sphi 0, %s331
    $region4: #{tpu_custom_call.1} parent=1 // loop_header_branch
      %27 = sbr.rel (%p25) target = $region8
    $region5: #{tpu_custom_call.1} parent=1 // loop_body
      %s29 = ssub.s32 %s24, 1
      %s30 = ssub.s32 %s24, 2
      %s31 = sadd.s32 %s24, 1
      %s32 = smul.u32 %s24, 8
      %s33 = sld [smem:[#allocation4 + %s32]]
      %s34 = smul.u32 %s31, 8
      %s35 = sld [smem:[#allocation4 + %s34]]
      %s36 = ssub.s32 %s33, %s35
      %p37 = scmp.eq.s32.totalorder %s36, 0
      %s39 = sadd.s32 %s38, 1
      %s40 = scalar_select %p37, %s38, %s39
      %p43 = pneg %p37
      %p44 = scmp.eq.s32.totalorder %s24, 1
      %p45 = por %p43, %p44
      %p46 = scmp.ne.s32.totalorder %s38, %s41
      %p47 = scmp.eq.s32.totalorder %s24, 0
      %p48 = por %p46, %p47
      %p49 = scmp.ne.s32.totalorder %s38, %s41
      %p50 = scmp.eq.s32.totalorder %s29, 1
      %p51 = por %p49, %p50
      %p52 = scmp.ne.s32.totalorder %s41, %s42
      %p53 = scmp.eq.s32.totalorder %s29, 0
      %p54 = por %p52, %p53
      %p55 = scmp.ne.s32.totalorder %s41, %s42
      %p56 = scmp.eq.s32.totalorder %s30, 1
      %p57 = por %p55, %p56
      %p59 = scmp.ne.s32.totalorder %s42, %s58
      %p60 = scmp.eq.s32.totalorder %s30, 0
      %p61 = por %p59, %p60
      %s62 = smul.u32 %s24, 8
      %s63 = sadd.s32 %s62, 1
      %s64 = sld [smem:[#allocation4 + %s63]]
      %s65 = smul.u32 %s31, 8
      %s66 = sadd.s32 %s65, 1
      %s67 = sld [smem:[#allocation4 + %s66]]
      %s68 = ssub.s32 %s64, %s67
      %p69 = scmp.eq.s32.totalorder %s68, 0
      %s71 = sadd.s32 %s70, 1
      %s72 = scalar_select %p69, %s70, %s71
      %p75 = pneg %p69
      %p76 = scmp.eq.s32.totalorder %s24, 1
      %p77 = por %p75, %p76
      %p78 = scmp.ne.s32.totalorder %s70, %s73
      %p79 = scmp.eq.s32.totalorder %s24, 0
      %p80 = por %p78, %p79
      %p81 = scmp.ne.s32.totalorder %s70, %s73
      %p82 = scmp.eq.s32.totalorder %s29, 1
      %p83 = por %p81, %p82
      %p84 = scmp.ne.s32.totalorder %s73, %s74
      %p85 = scmp.eq.s32.totalorder %s29, 0
      %p86 = por %p84, %p85
      %p87 = scmp.ne.s32.totalorder %s73, %s74
      %p88 = scmp.eq.s32.totalorder %s30, 1
      %p89 = por %p87, %p88
      %p91 = scmp.ne.s32.totalorder %s74, %s90
      %p92 = scmp.eq.s32.totalorder %s30, 0
      %p93 = por %p91, %p92
      %s94 = smul.u32 %s24, 8
      %s95 = sadd.s32 %s94, 2
      %s96 = sld [smem:[#allocation4 + %s95]]
      %s97 = smul.u32 %s31, 8
      %s98 = sadd.s32 %s97, 2
      %s99 = sld [smem:[#allocation4 + %s98]]
      %s100 = ssub.s32 %s96, %s99
      %p101 = scmp.eq.s32.totalorder %s100, 0
      %s103 = sadd.s32 %s102, 1
      %s104 = scalar_select %p101, %s102, %s103
      %p107 = pneg %p101
      %p108 = scmp.eq.s32.totalorder %s24, 1
      %p109 = por %p107, %p108
      %p110 = scmp.ne.s32.totalorder %s102, %s105
      %p111 = scmp.eq.s32.totalorder %s24, 0
      %p112 = por %p110, %p111
      %p113 = scmp.ne.s32.totalorder %s102, %s105
      %p114 = scmp.eq.s32.totalorder %s29, 1
      %p115 = por %p113, %p114
      %p116 = scmp.ne.s32.totalorder %s105, %s106
      %p117 = scmp.eq.s32.totalorder %s29, 0
      %p118 = por %p116, %p117
      %p119 = scmp.ne.s32.totalorder %s105, %s106
      %p120 = scmp.eq.s32.totalorder %s30, 1
      %p121 = por %p119, %p120
      %p123 = scmp.ne.s32.totalorder %s106, %s122
      %p124 = scmp.eq.s32.totalorder %s30, 0
      %p125 = por %p123, %p124
      %s126 = smul.u32 %s24, 8
      %s127 = sadd.s32 %s126, 3
      %s128 = sld [smem:[#allocation4 + %s127]]
      %s129 = smul.u32 %s31, 8
      %s130 = sadd.s32 %s129, 3
      %s131 = sld [smem:[#allocation4 + %s130]]
      %s132 = ssub.s32 %s128, %s131
      %p133 = scmp.eq.s32.totalorder %s132, 0
      %s135 = sadd.s32 %s134, 1
      %s136 = scalar_select %p133, %s134, %s135
      %p139 = pneg %p133
      %p140 = scmp.eq.s32.totalorder %s24, 1
      %p141 = por %p139, %p140
      %p142 = scmp.ne.s32.totalorder %s134, %s137
      %p143 = scmp.eq.s32.totalorder %s24, 0
      %p144 = por %p142, %p143
      %p145 = scmp.ne.s32.totalorder %s134, %s137
      %p146 = scmp.eq.s32.totalorder %s29, 1
      %p147 = por %p145, %p146
      %p148 = scmp.ne.s32.totalorder %s137, %s138
      %p149 = scmp.eq.s32.totalorder %s29, 0
      %p150 = por %p148, %p149
      %p151 = scmp.ne.s32.totalorder %s137, %s138
      %p152 = scmp.eq.s32.totalorder %s30, 1
      %p153 = por %p151, %p152
      %p155 = scmp.ne.s32.totalorder %s138, %s154
      %p156 = scmp.eq.s32.totalorder %s30, 0
      %p157 = por %p155, %p156
      %s158 = smul.u32 %s24, 8
      %s159 = sadd.s32 %s158, 4
      %s160 = sld [smem:[#allocation4 + %s159]]
      %s161 = smul.u32 %s31, 8
      %s162 = sadd.s32 %s161, 4
      %s163 = sld [smem:[#allocation4 + %s162]]
      %s164 = ssub.s32 %s160, %s163
      %p165 = scmp.eq.s32.totalorder %s164, 0
      %s167 = sadd.s32 %s166, 1
      %s168 = scalar_select %p165, %s166, %s167
      %p171 = pneg %p165
      %p172 = scmp.eq.s32.totalorder %s24, 1
      %p173 = por %p171, %p172
      %p174 = scmp.ne.s32.totalorder %s166, %s169
      %p175 = scmp.eq.s32.totalorder %s24, 0
      %p176 = por %p174, %p175
      %p177 = scmp.ne.s32.totalorder %s166, %s169
      %p178 = scmp.eq.s32.totalorder %s29, 1
      %p179 = por %p177, %p178
      %p180 = scmp.ne.s32.totalorder %s169, %s170
      %p181 = scmp.eq.s32.totalorder %s29, 0
      %p182 = por %p180, %p181
      %p183 = scmp.ne.s32.totalorder %s169, %s170
      %p184 = scmp.eq.s32.totalorder %s30, 1
      %p185 = por %p183, %p184
      %p187 = scmp.ne.s32.totalorder %s170, %s186
      %p188 = scmp.eq.s32.totalorder %s30, 0
      %p189 = por %p187, %p188
      %s190 = smul.u32 %s24, 8
      %s191 = sadd.s32 %s190, 5
      %s192 = sld [smem:[#allocation4 + %s191]]
      %s193 = smul.u32 %s31, 8
      %s194 = sadd.s32 %s193, 5
      %s195 = sld [smem:[#allocation4 + %s194]]
      %s196 = ssub.s32 %s192, %s195
      %p197 = scmp.eq.s32.totalorder %s196, 0
      %s199 = sadd.s32 %s198, 1
      %s200 = scalar_select %p197, %s198, %s199
      %p203 = pneg %p197
      %p204 = scmp.eq.s32.totalorder %s24, 1
      %p205 = por %p203, %p204
      %p206 = scmp.ne.s32.totalorder %s198, %s201
      %p207 = scmp.eq.s32.totalorder %s24, 0
      %p208 = por %p206, %p207
      %p209 = scmp.ne.s32.totalorder %s198, %s201
      %p210 = scmp.eq.s32.totalorder %s29, 1
      %p211 = por %p209, %p210
      %p212 = scmp.ne.s32.totalorder %s201, %s202
      %p213 = scmp.eq.s32.totalorder %s29, 0
      %p214 = por %p212, %p213
      %p215 = scmp.ne.s32.totalorder %s201, %s202
      %p216 = scmp.eq.s32.totalorder %s30, 1
      %p217 = por %p215, %p216
      %p219 = scmp.ne.s32.totalorder %s202, %s218
      %p220 = scmp.eq.s32.totalorder %s30, 0
      %p221 = por %p219, %p220
      %s222 = smul.u32 %s24, 8
      %s223 = sadd.s32 %s222, 6
      %s224 = sld [smem:[#allocation4 + %s223]]
      %s225 = smul.u32 %s31, 8
      %s226 = sadd.s32 %s225, 6
      %s227 = sld [smem:[#allocation4 + %s226]]
      %s228 = ssub.s32 %s224, %s227
      %p229 = scmp.eq.s32.totalorder %s228, 0
      %s231 = sadd.s32 %s230, 1
      %s232 = scalar_select %p229, %s230, %s231
      %p235 = pneg %p229
      %p236 = scmp.eq.s32.totalorder %s24, 1
      %p237 = por %p235, %p236
      %p238 = scmp.ne.s32.totalorder %s230, %s233
      %p239 = scmp.eq.s32.totalorder %s24, 0
      %p240 = por %p238, %p239
      %p241 = scmp.ne.s32.totalorder %s230, %s233
      %p242 = scmp.eq.s32.totalorder %s29, 1
      %p243 = por %p241, %p242
      %p244 = scmp.ne.s32.totalorder %s233, %s234
      %p245 = scmp.eq.s32.totalorder %s29, 0
      %p246 = por %p244, %p245
      %p247 = scmp.ne.s32.totalorder %s233, %s234
      %p248 = scmp.eq.s32.totalorder %s30, 1
      %p249 = por %p247, %p248
      %p251 = scmp.ne.s32.totalorder %s234, %s250
      %p252 = scmp.eq.s32.totalorder %s30, 0
      %p253 = por %p251, %p252
      %s254 = smul.u32 %s24, 8
      %s255 = sadd.s32 %s254, 7
      %s256 = sld [smem:[#allocation4 + %s255]]
      %s257 = smul.u32 %s31, 8
      %s258 = sadd.s32 %s257, 7
      %s259 = sld [smem:[#allocation4 + %s258]]
      %s260 = ssub.s32 %s256, %s259
      %p261 = scmp.eq.s32.totalorder %s260, 0
      %s263 = sadd.s32 %s262, 1
      %s264 = scalar_select %p261, %s262, %s263
      %p267 = pneg %p261
      %p268 = scmp.eq.s32.totalorder %s24, 1
      %p269 = por %p267, %p268
      %p270 = scmp.ne.s32.totalorder %s262, %s265
      %p271 = scmp.eq.s32.totalorder %s24, 0
      %p272 = por %p270, %p271
      %p273 = scmp.ne.s32.totalorder %s262, %s265
      %p274 = scmp.eq.s32.totalorder %s29, 1
      %p275 = por %p273, %p274
      %p276 = scmp.ne.s32.totalorder %s265, %s266
      %p277 = scmp.eq.s32.totalorder %s29, 0
      %p278 = por %p276, %p277
      %p279 = scmp.ne.s32.totalorder %s265, %s266
      %p280 = scmp.eq.s32.totalorder %s30, 1
      %p281 = por %p279, %p280
      %p283 = scmp.ne.s32.totalorder %s266, %s282
      %p284 = scmp.eq.s32.totalorder %s30, 0
      %p285 = por %p283, %p284
      %s287 = sadd.s32 %s286, 1
      %p290 = scmp.eq.s32.totalorder %s24, 1
      %p291 = scmp.ne.s32.totalorder %s286, %s288
      %p292 = scmp.eq.s32.totalorder %s24, 0
      %p293 = por %p291, %p292
      %p294 = scmp.ne.s32.totalorder %s286, %s288
      %p295 = scmp.eq.s32.totalorder %s29, 1
      %p296 = por %p294, %p295
      %p297 = scmp.ne.s32.totalorder %s288, %s289
      %p298 = scmp.eq.s32.totalorder %s29, 0
      %p299 = por %p297, %p298
      %p300 = scmp.ne.s32.totalorder %s288, %s289
      %p301 = scmp.eq.s32.totalorder %s30, 1
      %p302 = por %p300, %p301
      %p304 = scmp.ne.s32.totalorder %s289, %s303
      %p305 = scmp.eq.s32.totalorder %s30, 0
      %p306 = por %p304, %p305
      %s308 = sadd.s32 %s307, 1
      %p311 = scmp.eq.s32.totalorder %s24, 1
      %p312 = scmp.ne.s32.totalorder %s307, %s309
      %p313 = scmp.eq.s32.totalorder %s24, 0
      %p314 = por %p312, %p313
      %p315 = scmp.ne.s32.totalorder %s307, %s309
      %p316 = scmp.eq.s32.totalorder %s29, 1
      %p317 = por %p315, %p316
      %p318 = scmp.ne.s32.totalorder %s309, %s310
      %p319 = scmp.eq.s32.totalorder %s29, 0
      %p320 = por %p318, %p319
      %p321 = scmp.ne.s32.totalorder %s309, %s310
      %p322 = scmp.eq.s32.totalorder %s30, 1
      %p323 = por %p321, %p322
      %p325 = scmp.ne.s32.totalorder %s310, %s324
      %p326 = scmp.eq.s32.totalorder %s30, 0
      %p327 = por %p325, %p326
      %s329 = sadd.s32 %s328, 1
      %p332 = scmp.eq.s32.totalorder %s24, 1
      %p333 = scmp.ne.s32.totalorder %s328, %s330
      %p334 = scmp.eq.s32.totalorder %s24, 0
      %p335 = por %p333, %p334
      %p336 = scmp.ne.s32.totalorder %s328, %s330
      %p337 = scmp.eq.s32.totalorder %s29, 1
      %p338 = por %p336, %p337
      %p339 = scmp.ne.s32.totalorder %s330, %s331
      %p340 = scmp.eq.s32.totalorder %s29, 0
      %p341 = por %p339, %p340
      %p342 = scmp.ne.s32.totalorder %s330, %s331
      %p343 = scmp.eq.s32.totalorder %s30, 1
      %p344 = por %p342, %p343
      %p346 = scmp.ne.s32.totalorder %s331, %s345
      %p347 = scmp.eq.s32.totalorder %s30, 0
      %p348 = por %p346, %p347
      %p349 = scmp.le.s32.totalorder 1, %s24
      %p350 = scmp.lt.s32.totalorder %s24, 3
      %p351 = pnand %p349, %p350
      %p352 = pneg %p351
      // Predicated region
      $region9: #{tpu_custom_call.1} parent=5 // pred_check
        _
      $region10: #{tpu_custom_call.1} parent=5 // pred_check_branch
        %354 = sbr.rel (%p351) target = $region12
      $region11: #{tpu_custom_call.1} parent=5 // pred_region
        %s355 = ssub.s32 %s24, 1
        // Predicated region
        $region13: #{tpu_custom_call.1} parent=11 // pred_check
          %p356 = pneg %p299
        $region14: #{tpu_custom_call.1} parent=11 // pred_check_branch
          %358 = sbr.rel (%p356) target = $region16
        $region15: #{tpu_custom_call.1} parent=11 // pred_region
          _
        $region16: #{tpu_custom_call.1} parent=11 // pred_fallthru
          _
        // Predicated region
        $region17: #{tpu_custom_call.1} parent=11 // pred_check
          %p359 = pneg %p320
        $region18: #{tpu_custom_call.1} parent=11 // pred_check_branch
          %361 = sbr.rel (%p359) target = $region20
        $region19: #{tpu_custom_call.1} parent=11 // pred_region
          _
        $region20: #{tpu_custom_call.1} parent=11 // pred_fallthru
          _
      $region12: #{tpu_custom_call.1} parent=5 // pred_fallthru
        _
      %p362 = scmp.lt.s32.totalorder %s24, 2
      // Predicated region
      $region21: #{tpu_custom_call.1} parent=5 // pred_check
        %p363 = pneg %p362
      $region22: #{tpu_custom_call.1} parent=5 // pred_check_branch
        %365 = sbr.rel (%p363) target = $region24
      $region23: #{tpu_custom_call.1} parent=5 // pred_region
        // Predicated region
        $region25: #{tpu_custom_call.1} parent=23 // pred_check
          %p366 = pneg %p48
        $region26: #{tpu_custom_call.1} parent=23 // pred_check_branch
          %368 = sbr.rel (%p366) target = $region28
        $region27: #{tpu_custom_call.1} parent=23 // pred_region
          %s369 = smul.u32 %s24, 8
          %s370 = sld [smem:[#allocation4 + %s369]]
          %p371 = scmp.lt.s32.totalorder %s370, 99
          %s372 = scalar_select %p371, %s370, 99
          %s373 = scalar_lea.vmem %s1, %s372
          %s374 = smul.u32 %s24, 8
          %s375 = sld [smem:[#allocation4 + %s374]]
        $region28: #{tpu_custom_call.1} parent=23 // pred_fallthru
          _
        // Predicated region
        $region29: #{tpu_custom_call.1} parent=23 // pred_check
          %p376 = pneg %p80
        $region30: #{tpu_custom_call.1} parent=23 // pred_check_branch
          %378 = sbr.rel (%p376) target = $region32
        $region31: #{tpu_custom_call.1} parent=23 // pred_region
          %s379 = smul.u32 %s24, 8
          %s380 = sadd.s32 %s379, 1
          %s381 = sld [smem:[#allocation4 + %s380]]
          %p382 = scmp.lt.s32.totalorder %s381, 99
          %s383 = scalar_select %p382, %s381, 99
          %s384 = scalar_lea.vmem %s2, %s383
          %s385 = smul.u32 %s24, 8
          %s386 = sadd.s32 %s385, 1
          %s387 = sld [smem:[#allocation4 + %s386]]
        $region32: #{tpu_custom_call.1} parent=23 // pred_fallthru
          _
        // Predicated region
        $region33: #{tpu_custom_call.1} parent=23 // pred_check
          %p388 = pneg %p112
        $region34: #{tpu_custom_call.1} parent=23 // pred_check_branch
          %390 = sbr.rel (%p388) target = $region36
        $region35: #{tpu_custom_call.1} parent=23 // pred_region
          %s391 = smul.u32 %s24, 8
          %s392 = sadd.s32 %s391, 2
          %s393 = sld [smem:[#allocation4 + %s392]]
          %p394 = scmp.lt.s32.totalorder %s393, 99
          %s395 = scalar_select %p394, %s393, 99
          %s396 = scalar_lea.vmem %s3, %s395
          %s397 = smul.u32 %s24, 8
          %s398 = sadd.s32 %s397, 2
          %s399 = sld [smem:[#allocation4 + %s398]]
        $region36: #{tpu_custom_call.1} parent=23 // pred_fallthru
          _
        // Predicated region
        $region37: #{tpu_custom_call.1} parent=23 // pred_check
          %p400 = pneg %p144
        $region38: #{tpu_custom_call.1} parent=23 // pred_check_branch
          %402 = sbr.rel (%p400) target = $region40
        $region39: #{tpu_custom_call.1} parent=23 // pred_region
          %s403 = smul.u32 %s24, 8
          %s404 = sadd.s32 %s403, 3
          %s405 = sld [smem:[#allocation4 + %s404]]
          %p406 = scmp.lt.s32.totalorder %s405, 99
          %s407 = scalar_select %p406, %s405, 99
          %s408 = scalar_lea.vmem %s4, %s407
          %s409 = smul.u32 %s24, 8
          %s410 = sadd.s32 %s409, 3
          %s411 = sld [smem:[#allocation4 + %s410]]
        $region40: #{tpu_custom_call.1} parent=23 // pred_fallthru
          _
        // Predicated region
        $region41: #{tpu_custom_call.1} parent=23 // pred_check
          %p412 = pneg %p176
        $region42: #{tpu_custom_call.1} parent=23 // pred_check_branch
          %414 = sbr.rel (%p412) target = $region44
        $region43: #{tpu_custom_call.1} parent=23 // pred_region
          %s415 = smul.u32 %s24, 8
          %s416 = sadd.s32 %s415, 4
          %s417 = sld [smem:[#allocation4 + %s416]]
          %p418 = scmp.lt.s32.totalorder %s417, 99
          %s419 = scalar_select %p418, %s417, 99
          %s420 = scalar_lea.vmem %s5, %s419
          %s421 = smul.u32 %s24, 8
          %s422 = sadd.s32 %s421, 4
          %s423 = sld [smem:[#allocation4 + %s422]]
        $region44: #{tpu_custom_call.1} parent=23 // pred_fallthru
          _
        // Predicated region
        $region45: #{tpu_custom_call.1} parent=23 // pred_check
          %p424 = pneg %p208
        $region46: #{tpu_custom_call.1} parent=23 // pred_check_branch
          %426 = sbr.rel (%p424) target = $region48
        $region47: #{tpu_custom_call.1} parent=23 // pred_region
          %s427 = smul.u32 %s24, 8
          %s428 = sadd.s32 %s427, 5
          %s429 = sld [smem:[#allocation4 + %s428]]
          %p430 = scmp.lt.s32.totalorder %s429, 99
          %s431 = scalar_select %p430, %s429, 99
          %s432 = scalar_lea.vmem %s6, %s431
          %s433 = smul.u32 %s24, 8
          %s434 = sadd.s32 %s433, 5
          %s435 = sld [smem:[#allocation4 + %s434]]
        $region48: #{tpu_custom_call.1} parent=23 // pred_fallthru
          _
        // Predicated region
        $region49: #{tpu_custom_call.1} parent=23 // pred_check
          %p436 = pneg %p240
        $region50: #{tpu_custom_call.1} parent=23 // pred_check_branch
          %438 = sbr.rel (%p436) target = $region52
        $region51: #{tpu_custom_call.1} parent=23 // pred_region
          %s439 = smul.u32 %s24, 8
          %s440 = sadd.s32 %s439, 6
          %s441 = sld [smem:[#allocation4 + %s440]]
          %p442 = scmp.lt.s32.totalorder %s441, 99
          %s443 = scalar_select %p442, %s441, 99
          %s444 = scalar_lea.vmem %s7, %s443
          %s445 = smul.u32 %s24, 8
          %s446 = sadd.s32 %s445, 6
          %s447 = sld [smem:[#allocation4 + %s446]]
        $region52: #{tpu_custom_call.1} parent=23 // pred_fallthru
          _
        // Predicated region
        $region53: #{tpu_custom_call.1} parent=23 // pred_check
          %p448 = pneg %p272
        $region54: #{tpu_custom_call.1} parent=23 // pred_check_branch
          %450 = sbr.rel (%p448) target = $region56
        $region55: #{tpu_custom_call.1} parent=23 // pred_region
          %s451 = smul.u32 %s24, 8
          %s452 = sadd.s32 %s451, 7
          %s453 = sld [smem:[#allocation4 + %s452]]
          %p454 = scmp.lt.s32.totalorder %s453, 99
          %s455 = scalar_select %p454, %s453, 99
          %s456 = scalar_lea.vmem %s8, %s455
          %s457 = smul.u32 %s24, 8
          %s458 = sadd.s32 %s457, 7
          %s459 = sld [smem:[#allocation4 + %s458]]
        $region56: #{tpu_custom_call.1} parent=23 // pred_fallthru
          _
      $region24: #{tpu_custom_call.1} parent=5 // pred_fallthru
        _
      %p460 = scmp.le.s32.totalorder 1, %s24
      %p461 = scmp.lt.s32.totalorder %s24, 3
      %p462 = pnand %p460, %p461
      %p463 = pneg %p462
      // Predicated region
      $region57: #{tpu_custom_call.1} parent=5 // pred_check
        _
      $region58: #{tpu_custom_call.1} parent=5 // pred_check_branch
        %465 = sbr.rel (%p462) target = $region60
      $region59: #{tpu_custom_call.1} parent=5 // pred_region
        %s466 = ssub.s32 %s24, 1
        %s467 = smul.u32 %s29, 8
        %s468 = sld [smem:[#allocation4 + %s467]]
        %p469 = scmp.lt.s32.totalorder %s468, 99
        %s470 = scalar_select %p469, %s468, 99
        %s471 = scalar_lea.vmem %s1, %s470
        %p472 = pneg %p54
        %p473 = pneg %p51
        %s474 = smul.u32 %s29, 8
        %s475 = sadd.s32 %s474, 1
        %s476 = sld [smem:[#allocation4 + %s475]]
        %p477 = scmp.lt.s32.totalorder %s476, 99
        %s478 = scalar_select %p477, %s476, 99
        %s479 = scalar_lea.vmem %s2, %s478
        %p480 = pneg %p86
        %p481 = pneg %p83
        %s482 = smul.u32 %s29, 8
        %s483 = sadd.s32 %s482, 2
        %s484 = sld [smem:[#allocation4 + %s483]]
        %p485 = scmp.lt.s32.totalorder %s484, 99
        %s486 = scalar_select %p485, %s484, 99
        %s487 = scalar_lea.vmem %s3, %s486
        %p488 = pneg %p118
        %p489 = pneg %p115
        %s490 = smul.u32 %s29, 8
        %s491 = sadd.s32 %s490, 3
        %s492 = sld [smem:[#allocation4 + %s491]]
        %p493 = scmp.lt.s32.totalorder %s492, 99
        %s494 = scalar_select %p493, %s492, 99
        %s495 = scalar_lea.vmem %s4, %s494
        %p496 = pneg %p150
        %p497 = pneg %p147
        %s498 = smul.u32 %s29, 8
        %s499 = sadd.s32 %s498, 4
        %s500 = sld [smem:[#allocation4 + %s499]]
        %p501 = scmp.lt.s32.totalorder %s500, 99
        %s502 = scalar_select %p501, %s500, 99
        %s503 = scalar_lea.vmem %s5, %s502
        %p504 = pneg %p182
        %p505 = pneg %p179
        %s506 = smul.u32 %s29, 8
        %s507 = sadd.s32 %s506, 5
        %s508 = sld [smem:[#allocation4 + %s507]]
        %p509 = scmp.lt.s32.totalorder %s508, 99
        %s510 = scalar_select %p509, %s508, 99
        %s511 = scalar_lea.vmem %s6, %s510
        %p512 = pneg %p214
        %p513 = pneg %p211
        %s514 = smul.u32 %s29, 8
        %s515 = sadd.s32 %s514, 6
        %s516 = sld [smem:[#allocation4 + %s515]]
        %p517 = scmp.lt.s32.totalorder %s516, 99
        %s518 = scalar_select %p517, %s516, 99
        %s519 = scalar_lea.vmem %s7, %s518
        %p520 = pneg %p246
        %p521 = pneg %p243
        %s522 = smul.u32 %s29, 8
        %s523 = sadd.s32 %s522, 7
        %s524 = sld [smem:[#allocation4 + %s523]]
        %p525 = scmp.lt.s32.totalorder %s524, 99
        %s526 = scalar_select %p525, %s524, 99
        %s527 = scalar_lea.vmem %s8, %s526
        %p528 = pneg %p278
        %p529 = pneg %p275
        %p530 = pneg %p299
        %p531 = pneg %p296
        %p532 = pneg %p320
        %p533 = pneg %p317
        %p534 = pneg %p341
        %p535 = pneg %p338
        %s536 = smul.u32 %s29, 8
        %s537 = sld [smem:[#allocation4 + %s536]]
        %p538 = scmp.lt.s32.totalorder %s537, 99
        %s539 = scalar_select %p538, %s537, 99
        %s540 = scalar_lea.vmem %s1, %s539
        %s541 = smul.u32 %s29, 8
        %s542 = sld [smem:[#allocation4 + %s541]]
        %s543 = smul.u32 %s29, 8
        %s544 = sadd.s32 %s543, 1
        %s545 = sld [smem:[#allocation4 + %s544]]
        %p546 = scmp.lt.s32.totalorder %s545, 99
        %s547 = scalar_select %p546, %s545, 99
        %s548 = scalar_lea.vmem %s2, %s547
        %s549 = smul.u32 %s29, 8
        %s550 = sadd.s32 %s549, 1
        %s551 = sld [smem:[#allocation4 + %s550]]
        %s552 = smul.u32 %s29, 8
        %s553 = sadd.s32 %s552, 2
        %s554 = sld [smem:[#allocation4 + %s553]]
        %p555 = scmp.lt.s32.totalorder %s554, 99
        %s556 = scalar_select %p555, %s554, 99
        %s557 = scalar_lea.vmem %s3, %s556
        %s558 = smul.u32 %s29, 8
        %s559 = sadd.s32 %s558, 2
        %s560 = sld [smem:[#allocation4 + %s559]]
        %s561 = smul.u32 %s29, 8
        %s562 = sadd.s32 %s561, 3
        %s563 = sld [smem:[#allocation4 + %s562]]
        %p564 = scmp.lt.s32.totalorder %s563, 99
        %s565 = scalar_select %p564, %s563, 99
        %s566 = scalar_lea.vmem %s4, %s565
        %s567 = smul.u32 %s29, 8
        %s568 = sadd.s32 %s567, 3
        %s569 = sld [smem:[#allocation4 + %s568]]
        %s570 = smul.u32 %s29, 8
        %s571 = sadd.s32 %s570, 4
        %s572 = sld [smem:[#allocation4 + %s571]]
        %p573 = scmp.lt.s32.totalorder %s572, 99
        %s574 = scalar_select %p573, %s572, 99
        %s575 = scalar_lea.vmem %s5, %s574
        %s576 = smul.u32 %s29, 8
        %s577 = sadd.s32 %s576, 4
        %s578 = sld [smem:[#allocation4 + %s577]]
        %s579 = smul.u32 %s29, 8
        %s580 = sadd.s32 %s579, 5
        %s581 = sld [smem:[#allocation4 + %s580]]
        %p582 = scmp.lt.s32.totalorder %s581, 99
        %s583 = scalar_select %p582, %s581, 99
        %s584 = scalar_lea.vmem %s6, %s583
        %s585 = smul.u32 %s29, 8
        %s586 = sadd.s32 %s585, 5
        %s587 = sld [smem:[#allocation4 + %s586]]
        %s588 = smul.u32 %s29, 8
        %s589 = sadd.s32 %s588, 6
        %s590 = sld [smem:[#allocation4 + %s589]]
        %p591 = scmp.lt.s32.totalorder %s590, 99
        %s592 = scalar_select %p591, %s590, 99
        %s593 = scalar_lea.vmem %s7, %s592
        %s594 = smul.u32 %s29, 8
        %s595 = sadd.s32 %s594, 6
        %s596 = sld [smem:[#allocation4 + %s595]]
        %s597 = smul.u32 %s29, 8
        %s598 = sadd.s32 %s597, 7
        %s599 = sld [smem:[#allocation4 + %s598]]
        %p600 = scmp.lt.s32.totalorder %s599, 99
        %s601 = scalar_select %p600, %s599, 99
        %s602 = scalar_lea.vmem %s8, %s601
        %s603 = smul.u32 %s29, 8
        %s604 = sadd.s32 %s603, 7
        %s605 = sld [smem:[#allocation4 + %s604]]
        %p606 = scmp.eq.s32.totalorder %s29, 0
        // Predicated region
        $region61: #{tpu_custom_call.1} parent=59 // pred_check
          %p607 = pneg %p606
        $region62: #{tpu_custom_call.1} parent=59 // pred_check_branch
          %609 = sbr.rel (%p607) target = $region64
        $region63: #{tpu_custom_call.1} parent=59 // pred_region
          %vm610 = vcmask 253952
          %611 = vst.msk [vmem:[#allocation2] sm:$0x1] %vm610, 0.0
        $region64: #{tpu_custom_call.1} parent=59 // pred_fallthru
          _
        %v612 = vld [vmem:[%s540] sm:$0x1]
        %v613 = vld [vmem:[%s548] sm:$0x1]
        %v614 = vadd.f32 %v612, %v613
        %v615 = vld [vmem:[%s557] sm:$0x1]
        %s616 = smul.u32 %s29, 8
        %s617 = sadd.s32 %s616, 2
        %p618 = scmp.lt.s32.totalorder %s617, 10
        %s619 = scalar_select %p618, 1, 0
        %v620 = vstv %s619
        %vm621 = vcmp.eq.s32.totalorder %v620, 1
        %v622 = vsel %vm621, %v615, 0.0
        %v623 = vadd.f32 %v614, %v622
        %v624 = vld [vmem:[%s566] sm:$0x1]
        %s625 = sadd.s32 %s616, 3
        %p626 = scmp.lt.s32.totalorder %s625, 10
        %s627 = scalar_select %p626, 1, 0
        %v628 = vstv %s627
        %vm629 = vcmp.eq.s32.totalorder %v628, 1
        %v630 = vsel %vm629, %v624, 0.0
        %v631 = vadd.f32 %v623, %v630
        %v632 = vld [vmem:[%s575] sm:$0x1]
        %s633 = sadd.s32 %s616, 4
        %p634 = scmp.lt.s32.totalorder %s633, 10
        %s635 = scalar_select %p634, 1, 0
        %v636 = vstv %s635
        %vm637 = vcmp.eq.s32.totalorder %v636, 1
        %v638 = vsel %vm637, %v632, 0.0
        %v639 = vadd.f32 %v631, %v638
        %v640 = vld [vmem:[%s584] sm:$0x1]
        %s641 = sadd.s32 %s616, 5
        %p642 = scmp.lt.s32.totalorder %s641, 10
        %s643 = scalar_select %p642, 1, 0
        %v644 = vstv %s643
        %vm645 = vcmp.eq.s32.totalorder %v644, 1
        %v646 = vsel %vm645, %v640, 0.0
        %v647 = vadd.f32 %v639, %v646
        %v648 = vld [vmem:[%s593] sm:$0x1]
        %s649 = sadd.s32 %s616, 6
        %p650 = scmp.lt.s32.totalorder %s649, 10
        %s651 = scalar_select %p650, 1, 0
        %v652 = vstv %s651
        %vm653 = vcmp.eq.s32.totalorder %v652, 1
        %v654 = vsel %vm653, %v648, 0.0
        %v655 = vadd.f32 %v647, %v654
        %v656 = vld [vmem:[%s602] sm:$0x1]
        %s657 = sadd.s32 %s616, 7
        %p658 = scmp.lt.s32.totalorder %s657, 10
        %s659 = scalar_select %p658, 1, 0
        %v660 = vstv %s659
        %vm661 = vcmp.eq.s32.totalorder %v660, 1
        %v662 = vsel %vm661, %v656, 0.0
        %v663 = vadd.f32 %v655, %v662
        %v664 = vld [vmem:[#allocation2] sm:$0x1]
        %v665 = vadd.f32 %v664, %v663
        %vm666 = vcmask 253952
        %667 = vst.msk [vmem:[#allocation2] sm:$0x1] %vm666, %v665
        %p668 = scmp.eq.s32.totalorder %s29, 1
        // Predicated region
        $region65: #{tpu_custom_call.1} parent=59 // pred_check
          %p669 = pneg %p668
        $region66: #{tpu_custom_call.1} parent=59 // pred_check_branch
          %671 = sbr.rel (%p669) target = $region68
        $region67: #{tpu_custom_call.1} parent=59 // pred_region
          %v672 = vld [vmem:[#allocation2] sm:$0x1]
          %v673 = vld [vmem:[%s9] sm:$0xff]
          %v674 = vld [vmem:[%s9 + $0x8] sm:$0xff]
          %v675 = vld [vmem:[%s9 + $0x10] sm:$0xff]
          %v676 = vld [vmem:[%s9 + $0x18] sm:$0xff]
          %v677 = vld [vmem:[%s10] sm:$0x1]
          %vm678 = vcmask 261120
          %v680 = vsel %vm678, %v672, 0
          %682 = vmatprep.subr.mxu0 0.0
          %683 = vmatpush1.msra.mxu0 0.0
          %684 = vmatprep.subr.mxu0 0.0
          %685 = vmatpush1.msra.mxu0 0.0
          %686 = vmatprep.subr.mxu0 0.0
          %687 = vmatpush1.msra.mxu0 0.0
          %688 = vmatprep.subr.mxu0 0.0
          %689 = vmatpush1.msra.mxu0 0.0
          %690 = vmatprep.subr.mxu0 0.0
          %691 = vmatpush1.msra.mxu0 0.0
          %692 = vmatprep.subr.mxu0 0.0
          %693 = vmatpush1.msra.mxu0 0.0
          %694 = vmatprep.subr.mxu0 0.0
          %695 = vmatpush1.msra.mxu0 0.0
          %696 = vmatprep.subr.mxu0 0.0
          %697 = vmatpush1.msra.mxu0 0.0
          %698 = vmatprep.subr.mxu0 0.0
          %699 = vmatpush1.msra.mxu0 0.0
          %700 = vmatprep.subr.mxu0 0.0
          %701 = vmatpush1.msra.mxu0 0.0
          %702 = vmatprep.subr.mxu0 0.0
          %703 = vmatpush1.msra.mxu0 0.0
          %704 = vmatprep.subr.mxu0 0.0
          %705 = vmatpush1.msra.mxu0 0.0
          %706 = vmatprep.subr.mxu0 0.0
          %707 = vmatpush1.msra.mxu0 %v676
          %708 = vmatprep.subr.mxu0 0.0
          %709 = vmatpush1.msra.mxu0 %v675
          %710 = vmatprep.subr.mxu0 0.0
          %711 = vmatpush1.msra.mxu0 %v674
          %712 = vmatprep.subr.mxu0 0.0
          %713 = vmatpush1.msra.mxu0 %v673
          %714 = vmatprep.subr.mxu0 0.0
          %715 = vmatpush2.msra.mxu0 0.0
          %716 = vmatprep.subr.mxu0 0.0
          %717 = vmatpush2.msra.mxu0 0.0
          %718 = vmatprep.subr.mxu0 0.0
          %719 = vmatpush2.msra.mxu0 0.0
          %720 = vmatprep.subr.mxu0 0.0
          %721 = vmatpush2.msra.mxu0 0.0
          %722 = vmatprep.subr.mxu0 0.0
          %723 = vmatpush2.msra.mxu0 0.0
          %724 = vmatprep.subr.mxu0 0.0
          %725 = vmatpush2.msra.mxu0 0.0
          %726 = vmatprep.subr.mxu0 0.0
          %727 = vmatpush2.msra.mxu0 0.0
          %728 = vmatprep.subr.mxu0 0.0
          %729 = vmatpush2.msra.mxu0 0.0
          %730 = vmatprep.subr.mxu0 0.0
          %731 = vmatpush2.msra.mxu0 0.0
          %732 = vmatprep.subr.mxu0 0.0
          %733 = vmatpush2.msra.mxu0 0.0
          %734 = vmatprep.subr.mxu0 0.0
          %735 = vmatpush2.msra.mxu0 0.0
          %736 = vmatprep.subr.mxu0 0.0
          %737 = vmatpush2.msra.mxu0 0.0
          %738 = vmatprep.subr.mxu0 0.0
          %739 = vmatpush2.msra.mxu0 0.0
          %740 = vmatprep.subr.mxu0 0.0
          %741 = vmatpush2.msra.mxu0 0.0
          %742 = vmatprep.subr.mxu0 0.0
          %743 = vmatpush2.msra.mxu0 0.0
          %744 = vmatprep.subr.mxu0 0.0
          %745 = vmatpush2.msra.mxu0 0.0
          %746 = vmatprep.mubr.f32.mxu0 0.0
          %747 = vmatmul.mubr.f32.gmra.mxu0 %v680
          %v748 = vpop.f32.mrf.mxu0
          %v749 = vadd.f32 %v677, %v748
          %v750 = vpop.f32.mrf.mxu0
          %751 = vdwg.mxu0
          %752 = vst [vmem:[#allocation5] sm:$0x1] %v749
        $region68: #{tpu_custom_call.1} parent=59 // pred_fallthru
          _
        // Predicated region
        $region69: #{tpu_custom_call.1} parent=59 // pred_check
          %p753 = pneg %p338
        $region70: #{tpu_custom_call.1} parent=59 // pred_check_branch
          %755 = sbr.rel (%p753) target = $region72
        $region71: #{tpu_custom_call.1} parent=59 // pred_region
          %s757 = ssub.s32 16, 16
          %758 = vsyncadd [#allocation6], %s757
          %s760 = sshll.u32 [#allocation5], 4
          %s761 = int_to_ptr.vmem [resolvable:$true] %s760
          %763 = dma.vmem_to_hbm [thread:$0]  %s761, 16, %s11, [#allocation6]
        $region72: #{tpu_custom_call.1} parent=59 // pred_fallthru
          _
        // Predicated region
        $region73: #{tpu_custom_call.1} parent=59 // pred_check
          %p764 = pneg %p338
        $region74: #{tpu_custom_call.1} parent=59 // pred_check_branch
          %766 = sbr.rel (%p764) target = $region76
        $region75: #{tpu_custom_call.1} parent=59 // pred_region
          %767 = dma.done [#allocation6], 16
        $region76: #{tpu_custom_call.1} parent=59 // pred_fallthru
          _
      $region60: #{tpu_custom_call.1} parent=5 // pred_fallthru
        _
      %p768 = scmp.le.s32.totalorder 2, %s24
      // Predicated region
      $region77: #{tpu_custom_call.1} parent=5 // pred_check
        %p769 = pneg %p768
      $region78: #{tpu_custom_call.1} parent=5 // pred_check_branch
        %771 = sbr.rel (%p769) target = $region80
      $region79: #{tpu_custom_call.1} parent=5 // pred_region
        %s772 = ssub.s32 %s24, 2
      $region80: #{tpu_custom_call.1} parent=5 // pred_fallthru
        _
    $region6: #{tpu_custom_call.1} parent=1 // loop_footer
      %s28 = sadd.s32 1, %s24
    $region7: #{tpu_custom_call.1} parent=1 // loop_footer_branch
      %23 = sbr.rel target = $region3
    $region8: #{tpu_custom_call.1} parent=1 // loop_exit
      _
    %773 = vsyncpa [#allocation6], 1
    %s774 = scalar_lea.sflag [#allocation6], 1
    %775 = vsyncpa %s774, 1

</llo_original>
